<compile_context>
chip_gen: v6e
topology: v6e:2x2x1
jax: 0.10.0
libtpu: 0.0.40
codegen_flags: <defaults>
</compile_context>

<pallas_src>
import jax
import jax.numpy as jnp
from jax import lax
from jax.experimental import pallas as pl
from jax.experimental.pallas import tpu as pltpu

LANE = 128
SUB = 8


def _round_up(x, m):
    return (x + m - 1) // m * m


def _cdiv(a, b):
    return -(-a // b)


# ----------------------------- Pallas kernel -------------------------------
def _make_cv_kernel(zp):
    """Build the per-tile kernel (zp = lane-padded embedding-table rows)."""

    def cv_kernel(rm_ref, embt_ref, w1_ref, p_ref, hsum_ref, grad_ref):
        """One atom-tile of the CV forward + analytic dCV/dR.

        Synthetic outnet (per atom i):
            pre_i = R_i @ W1 + emb[Z_i] + b1       (b1 folded into emb table)
            h_i   = tanh(pre_i)
            y_k   = sum_i mask_i * (h_i @ W2)_k + sum(mask) * b2_k   (wrapper)
        Gradient (fused contraction, hoisted P):
            grad[i, k*3+d] = mask_i * sum_h (1 - h_{i,h}^2) * P[h, k*3+d]
            with P[h, k*3+d] = W2[h,k] * W1[d,h] precomputed in the wrapper.
        """
        rm = rm_ref[...]                       # (TA, 5) = [R(3) | mask | Z]
        r = rm[:, 0:3]                         # (TA, 3)
        mask = rm[:, 3:4]                      # (TA, 1)   0 on padded rows
        z = rm[:, 4:5].astype(jnp.int32)       # (TA, 1)

        ta = rm.shape[0]
        # in-register one-hot(Z); lookup happens on the MXU against the
        # resident embedding table (emb_table + b1, lane padded).
        onehot = (z == lax.broadcasted_iota(jnp.int32, (ta, zp), 1)
                  ).astype(jnp.float32)        # (TA, Zp)

        pre = (jnp.dot(onehot, embt_ref[...], preferred_element_type=jnp.float32)
               + jnp.dot(r, w1_ref[...], preferred_element_type=jnp.float32))
        h = jnp.tanh(pre)                      # (TA, Hp)

        # masked sum-pool of the hidden layer -> per-tile partial output
        # (broadcast over the 8 sublanes so the output block is (8, Hp)).
        ph = jnp.sum(mask * h, axis=0, keepdims=True)          # (1, Hp)
        hsum_ref[...] = jnp.broadcast_to(ph, hsum_ref.shape)   # (8, Hp)

        # analytic gradient, one contraction; output is the REAL width
        # (3*n_cv columns) -> no padded HBM writeback.
        dtanh = 1.0 - h * h                                    # (TA, Hp)
        grad_ref[...] = (jnp.dot(dtanh, p_ref[...],
                                 preferred_element_type=jnp.float32) * mask)

    return cv_kernel


# ------------------------------ wrapper -------------------------------------
def cv_module_forward(Z, R, atom_mask, params, *, max_tile_atoms=2048):
    """JAX/Pallas equivalent of CVModule.forward.

    Returns dict with:
      "cv"      : (n_cv,) float32
      "cv_grad" : (n_cv, n_atoms, 3) float32   (stacked list of per-CV grads)
    """
    emb_table, w1, b1, w2, b2 = (params[k] for k in
                                 ("emb_table", "w1", "b1", "w2", "b2"))
    f32 = jnp.float32
    n_atoms = R.shape[0]
    hidden = w1.shape[1]
    n_cv = w2.shape[1]
    max_z = emb_table.shape[0]

    Hp = _round_up(hidden, LANE)          # lane-pad hidden
    Zp = _round_up(max_z, LANE)           # lane-pad embedding rows (contraction dim)
    GC = 3 * n_cv                         # flattened gradient columns (k*3+d), NOT padded

    # adaptive atom tile: <= max_tile_atoms, multiple of 8, minimal tail padding
    A8 = _round_up(n_atoms, SUB)
    n_tiles = max(1, _cdiv(A8, max_tile_atoms))
    TA = _round_up(_cdiv(A8, n_tiles), SUB)
    A_pad = n_tiles * TA

    # ---- glue / layout plumbing in plain JAX (cheap one-time XLA ops) ----
    # single merged per-atom stream: [R | mask | Z]  (20 B / atom in HBM)
    rm = jnp.concatenate(
        [R.astype(f32),
         atom_mask.astype(f32).reshape(n_atoms, 1),
         Z.astype(f32).reshape(n_atoms, 1)], axis=1)
    rm_p = jnp.pad(rm, ((0, A_pad - n_atoms), (0, 0)))   # padded rows: mask=0, Z=0

    def pad2(x, rows, cols):
        return jnp.pad(x.astype(f32),
                       ((0, rows - x.shape[0]), (0, cols - x.shape[1])))

    emb_eff = emb_table.astype(f32) + b1.astype(f32)     # fold b1 into the table
    embt_p = pad2(emb_eff, Zp, Hp)                       # resident (Zp, Hp)
    w1_p = pad2(w1, 3, Hp)                               # resident (3, Hp)
    # fused gradient projection P[h, k*3+d] = w2[h,k] * w1[d,h]  (hoisted)
    P = jnp.einsum("hk,dh->hkd", w2.astype(f32), w1.astype(f32)).reshape(hidden, GC)
    P_p = pad2(P, Hp, GC)                                # resident (Hp, GC)

    kernel = _make_cv_kernel(Zp)

    hsum_pad, grad_pad = pl.pallas_call(
        kernel,
        out_shape=(
            jax.ShapeDtypeStruct((n_tiles * SUB, Hp), f32),  # per-tile partial pooled h
            jax.ShapeDtypeStruct((A_pad, GC), f32),          # gradients, real width
        ),
        grid_spec=pltpu.PrefetchScalarGridSpec(
            num_scalar_prefetch=0,
            grid=(n_tiles,),
            in_specs=[
                pl.BlockSpec((TA, 5), lambda i: (i, 0)),     # [R|mask|Z] tile
                pl.BlockSpec((Zp, Hp), lambda i: (0, 0)),    # emb_table+b1 (resident)
                pl.BlockSpec((3, Hp), lambda i: (0, 0)),     # W1 (resident)
                pl.BlockSpec((Hp, GC), lambda i: (0, 0)),    # P  (resident)
            ],
            out_specs=(
                pl.BlockSpec((SUB, Hp), lambda i: (i, 0)),   # per-tile pooled h
                pl.BlockSpec((TA, GC), lambda i: (i, 0)),    # gradient slab
            ),
        ),
        compiler_params=pltpu.CompilerParams(
            dimension_semantics=("parallel",),               # independent tiles (v7x 2 TCs)
            vmem_limit_bytes=32 * 1024 * 1024,
        ),
    )(rm_p, embt_p, w1_p, P_p)

    # ---- epilogue: reduce partials, apply W2/b2 once, unpad & reshape grads ----
    pooled_h = jnp.sum(hsum_pad.reshape(n_tiles, SUB, Hp)[:, 0, :hidden], axis=0)
    y = pooled_h @ w2.astype(f32) + jnp.sum(atom_mask.astype(f32)) * b2.reshape(-1).astype(f32)
    grads = (grad_pad[:n_atoms, :]
             .reshape(n_atoms, n_cv, 3)
             .transpose(1, 0, 2))
    return {"cv": y, "cv_grad": grads}


# ------------------------- pure-JAX reference --------------------------------
def cv_module_reference(Z, R, atom_mask, params):
    emb_table, w1, b1, w2, b2 = (params[k] for k in
                                 ("emb_table", "w1", "b1", "w2", "b2"))

    def outnet(R_):
        emb = emb_table[Z]
        h = jnp.tanh(R_ @ w1 + emb + b1)
        o = h @ w2 + b2
        mask = atom_mask.astype(jnp.float32)[:, None]
        return jnp.sum(mask * o, axis=0)                # (n_cv,)

    y = outnet(R)
    # per-CV gradient, same semantics as the torch.autograd.grad loop
    grads = jax.jacrev(outnet)(R)                       # (n_cv, n_atoms, 3)
    return {"cv": y, "cv_grad": grads}


# --------------------------------- main --------------------------------------
if __name__ == "__main__":
    n_atoms, hidden, n_cv, max_z = 8, 32, 2, 10

    key = jax.random.PRNGKey(0)
    k_z, k_r, k_emb, k_w1, k_b1, k_w2, k_b2 = jax.random.split(key, 7)

    # deterministic synthetic inputs (schnetpack-style: Z, R, atom_mask)
    Z = jax.random.randint(k_z, (n_atoms,), 1, max_z)
    R = jax.random.normal(k_r, (n_atoms, 3), dtype=jnp.float32)
    atom_mask = jnp.array([1, 1, 1, 1, 1, 1, 0, 0], dtype=jnp.float32)

    # deterministic synthetic outnet parameters
    params = {
        "emb_table": 0.1 * jax.random.normal(k_emb, (max_z, hidden), jnp.float32),
        "w1": 0.3 * jax.random.normal(k_w1, (3, hidden), jnp.float32),
        "b1": 0.05 * jax.random.normal(k_b1, (1, hidden), jnp.float32),
        "w2": 0.3 * jax.random.normal(k_w2, (hidden, n_cv), jnp.float32),
        "b2": 0.05 * jax.random.normal(k_b2, (1, n_cv), jnp.float32),
    }

    out = cv_module_forward(Z, R, atom_mask, params)
    jax.block_until_ready(out)

    ref = cv_module_reference(Z, R, atom_mask, params)
    assert jnp.allclose(out["cv"], ref["cv"], atol=1e-5, rtol=1e-5)
    assert jnp.allclose(out["cv_grad"], ref["cv_grad"], atol=1e-5, rtol=1e-5)

    # TODO(synk): training-mode `create_graph` / higher-order autograd has no
    # inference-time Pallas analog; only the first-order dCV/dR is produced.
    print("KERNEL_OK")
</pallas_src>

<mosaic_0001>
module attributes {stable_mosaic.version = 11 : i64} {
  func.func @cv_kernel(%arg0: i32, %arg1: memref<8x5xf32, #tpu.memory_space<vmem>>, %arg2: memref<128x128xf32, #tpu.memory_space<vmem>>, %arg3: memref<3x128xf32, #tpu.memory_space<vmem>>, %arg4: memref<128x6xf32, #tpu.memory_space<vmem>>, %arg5: memref<8x128xf32, #tpu.memory_space<vmem>>, %arg6: memref<8x6xf32, #tpu.memory_space<vmem>>) attributes {dimension_semantics = [#tpu.dimension_semantics<parallel>], iteration_bounds = array<i64: 1>, scalar_prefetch = 0 : i64, scratch_operands = 0 : i64, tpu.core_type = #tpu.core_type<tc>, window_params = [{transform_indices = @transform_0, window_bounds = array<i64: 8, 5>}, {pipeline_mode = #tpu.pipeline_mode<synchronous>, transform_indices = @transform_1, window_bounds = array<i64: 128, 128>}, {pipeline_mode = #tpu.pipeline_mode<synchronous>, transform_indices = @transform_2, window_bounds = array<i64: 3, 128>}, {pipeline_mode = #tpu.pipeline_mode<synchronous>, transform_indices = @transform_3, window_bounds = array<i64: 128, 6>}, {transform_indices = @transform_4, window_bounds = array<i64: 8, 128>}, {transform_indices = @transform_5, window_bounds = array<i64: 8, 6>}]} {
    %c0 = arith.constant 0 : index
    %c0_0 = arith.constant 0 : index
    %0 = vector.load %arg1[%c0, %c0_0] : memref<8x5xf32, #tpu.memory_space<vmem>>, vector<8x5xf32>
    %1 = vector.extract_strided_slice %0 {offsets = [0, 0], sizes = [8, 3], strides = [1, 1]} : vector<8x5xf32> to vector<8x3xf32>
    %2 = vector.extract_strided_slice %0 {offsets = [0, 3], sizes = [8, 1], strides = [1, 1]} : vector<8x5xf32> to vector<8x1xf32>
    %3 = vector.extract_strided_slice %0 {offsets = [0, 4], sizes = [8, 1], strides = [1, 1]} : vector<8x5xf32> to vector<8x1xf32>
    %4 = arith.fptosi %3 : vector<8x1xf32> to vector<8x1xi32>
    %5 = tpu.iota {dimensions = array<i32: 1>} : vector<8x128xi32>
    %6 = vector.broadcast %4 : vector<8x1xi32> to vector<8x128xi32>
    %7 = arith.cmpi eq, %6, %5 : vector<8x128xi32>
    %8 = arith.extui %7 : vector<8x128xi1> to vector<8x128xi32>
    %9 = arith.sitofp %8 : vector<8x128xi32> to vector<8x128xf32>
    %c0_1 = arith.constant 0 : index
    %c0_2 = arith.constant 0 : index
    %10 = vector.load %arg2[%c0_1, %c0_2] : memref<128x128xf32, #tpu.memory_space<vmem>>, vector<128x128xf32>
    %cst = arith.constant dense<0.000000e+00> : vector<8x128xf32>
    %11 = tpu.matmul %9, %10, %cst {dimension_numbers = #tpu.dot_dimension_numbers<[1], [0], [0], [1], [0, 0, 1, 1], [], []>} : vector<8x128xf32>, vector<128x128xf32>, vector<8x128xf32> -> vector<8x128xf32>
    %c0_3 = arith.constant 0 : index
    %c0_4 = arith.constant 0 : index
    %12 = vector.load %arg3[%c0_3, %c0_4] : memref<3x128xf32, #tpu.memory_space<vmem>>, vector<3x128xf32>
    %cst_5 = arith.constant dense<0.000000e+00> : vector<8x128xf32>
    %13 = tpu.matmul %1, %12, %cst_5 {dimension_numbers = #tpu.dot_dimension_numbers<[1], [0], [0], [1], [0, 0, 1, 1], [], []>} : vector<8x3xf32>, vector<3x128xf32>, vector<8x128xf32> -> vector<8x128xf32>
    %14 = arith.addf %11, %13 : vector<8x128xf32>
    %15 = math.tanh %14 : vector<8x128xf32>
    %16 = vector.broadcast %2 : vector<8x1xf32> to vector<8x128xf32>
    %17 = arith.mulf %16, %15 : vector<8x128xf32>
    %cst_6 = arith.constant dense<0.000000e+00> : vector<128xf32>
    %18 = vector.multi_reduction <add>, %17, %cst_6 [0] : vector<8x128xf32> to vector<128xf32>
    %19 = vector.shape_cast %18 : vector<128xf32> to vector<1x128xf32>
    %20 = vector.shape_cast %19 : vector<1x128xf32> to vector<1x128xf32>
    %21 = vector.broadcast %20 : vector<1x128xf32> to vector<8x128xf32>
    %c0_7 = arith.constant 0 : index
    %c0_8 = arith.constant 0 : index
    %22 = vector.load %arg5[%c0_7, %c0_8] : memref<8x128xf32, #tpu.memory_space<vmem>>, vector<8x128xf32>
    tpu.vector_store %arg5[%c0_7, %c0_8], %21 {strides = array<i32>} : memref<8x128xf32, #tpu.memory_space<vmem>>, vector<8x128xf32>,
    %23 = arith.mulf %15, %15 : vector<8x128xf32>
    %cst_9 = arith.constant 1.000000e+00 : f32
    %24 = vector.broadcast %cst_9 : f32 to vector<8x128xf32>
    %25 = arith.subf %24, %23 : vector<8x128xf32>
    %c0_10 = arith.constant 0 : index
    %c0_11 = arith.constant 0 : index
    %26 = vector.load %arg4[%c0_10, %c0_11] : memref<128x6xf32, #tpu.memory_space<vmem>>, vector<128x6xf32>
    %cst_12 = arith.constant dense<0.000000e+00> : vector<8x6xf32>
    %27 = tpu.matmul %25, %26, %cst_12 {dimension_numbers = #tpu.dot_dimension_numbers<[1], [0], [0], [1], [0, 0, 1, 1], [], []>} : vector<8x128xf32>, vector<128x6xf32>, vector<8x6xf32> -> vector<8x6xf32>
    %28 = vector.broadcast %2 : vector<8x1xf32> to vector<8x6xf32>
    %29 = arith.mulf %27, %28 : vector<8x6xf32>
    %c0_13 = arith.constant 0 : index
    %c0_14 = arith.constant 0 : index
    %30 = vector.load %arg6[%c0_13, %c0_14] : memref<8x6xf32, #tpu.memory_space<vmem>>, vector<8x6xf32>
    tpu.vector_store %arg6[%c0_13, %c0_14], %29 {strides = array<i32>} : memref<8x6xf32, #tpu.memory_space<vmem>>, vector<8x6xf32>,
    return
  }
  func.func @transform_0(%arg0: i32) -> (i32, i32) {
    %c0_i32 = arith.constant 0 : i32
    %c0_i32_0 = arith.constant 0 : i32
    return %arg0, %c0_i32 : i32, i32
  }
  func.func @transform_1(%arg0: i32) -> (i32, i32) {
    %c0_i32 = arith.constant 0 : i32
    %c0_i32_0 = arith.constant 0 : i32
    %c0_i32_1 = arith.constant 0 : i32
    return %c0_i32, %c0_i32_0 : i32, i32
  }
  func.func @transform_2(%arg0: i32) -> (i32, i32) {
    %c0_i32 = arith.constant 0 : i32
    %c0_i32_0 = arith.constant 0 : i32
    %c0_i32_1 = arith.constant 0 : i32
    return %c0_i32, %c0_i32_0 : i32, i32
  }
  func.func @transform_3(%arg0: i32) -> (i32, i32) {
    %c0_i32 = arith.constant 0 : i32
    %c0_i32_0 = arith.constant 0 : i32
    %c0_i32_1 = arith.constant 0 : i32
    return %c0_i32, %c0_i32_0 : i32, i32
  }
  func.func @transform_4(%arg0: i32) -> (i32, i32) {
    %c0_i32 = arith.constant 0 : i32
    %c0_i32_0 = arith.constant 0 : i32
    return %arg0, %c0_i32 : i32, i32
  }
  func.func @transform_5(%arg0: i32) -> (i32, i32) {
    %c0_i32 = arith.constant 0 : i32
    %c0_i32_0 = arith.constant 0 : i32
    return %arg0, %c0_i32 : i32, i32
  }
}

</mosaic_0001>

<llo_original>
// kernel: tpu_custom_call.1
$region0: #{tpu_custom_call.1}
  #allocation0 [shape = 'u32[]', space=smem, size = 0x4, offset = 0x4, fixed_abs, tag = 'smem constant byte address 0x4 - core index']
  #allocation1 [shape = 'u32[144,128]{1,0:T(1,128)}', space=vmem, size = 0x12000, scoped, tag = 'internal scratch']
  %s0 = inlined_call_operand.vmem [shape: f32[8,5], index: 0, kind: input, shape index: {}]
  %s1 = inlined_call_operand.vmem [shape: f32[128,128], index: 1, kind: input, shape index: {}]
  %s2 = inlined_call_operand.hbm [shape: f32[3,128], index: 2, kind: input, shape index: {}]
  %s3 = inlined_call_operand.vmem [shape: f32[128,6], index: 3, kind: input, shape index: {}]
  %s4 = inlined_call_operand.hbm [shape: f32[8,128], index: 4, kind: output, shape index: {0}]
  %s5 = inlined_call_operand.hbm [shape: f32[8,6], index: 5, kind: output, shape index: {1}]
  %6 = xla_tuple %s4, %s5
  %s7 = sld [smem:[#allocation0]]
  $region38: #{tpu_custom_call.1} parent=0
    _
  %s9 = ssub.s32 1, %s7
  %s10 = scalar_select 0, %s9, %s7
  $region1: #{tpu_custom_call.1} parent=0
    #allocation2 [shape = 'u8[2048]{0}', space=vmem, size = 0x800, scoped, tag = 'input window, operand 2, single buffered']
    #allocation3 [shape = 's32[1]{0}', space=sflag, size = 0x4, scoped, tag = 'scoped memory for tpu_custom_call.1']
    #allocation4 [shape = 's32[1]{0}', space=sflag, size = 0x4, scoped, tag = 'scoped memory for tpu_custom_call.1']
    #allocation5 [shape = 'u8[4096]{0}', space=vmem, size = 0x1000, scoped, tag = 'output window, operand 0, single buffered']
    #allocation6 [shape = 'u8[4096]{0}', space=vmem, size = 0x1000, scoped, tag = 'output window, operand 1, single buffered']
    #allocation7 [shape = 's32[1]{0}', space=sflag, size = 0x4, scoped, tag = 'scoped memory for tpu_custom_call.1']
    %11 = vsyncpa [#allocation3], 0
    %12 = vsyncpa [#allocation4], 0
    %13 = vsyncpa [#allocation7], 0
    // Predicated region
    $region2: #{tpu_custom_call.1} parent=1 // pred_check
      _
    $region3: #{tpu_custom_call.1} parent=1 // pred_check_branch
      %15 = sbr.rel (0) target = $region5
    $region4: #{tpu_custom_call.1} parent=1 // pred_region
      _
    $region5: #{tpu_custom_call.1} parent=1 // pred_fallthru
      _
    // Predicated region
    $region6: #{tpu_custom_call.1} parent=1 // pred_check
      _
    $region7: #{tpu_custom_call.1} parent=1 // pred_check_branch
      %17 = sbr.rel (0) target = $region9
    $region8: #{tpu_custom_call.1} parent=1 // pred_region
      _
    $region9: #{tpu_custom_call.1} parent=1 // pred_fallthru
      _
    // Predicated region
    $region10: #{tpu_custom_call.1} parent=1 // pred_check
      _
    $region11: #{tpu_custom_call.1} parent=1 // pred_check_branch
      %19 = sbr.rel (0) target = $region13
    $region12: #{tpu_custom_call.1} parent=1 // pred_region
      %s21 = ssub.s32 64, 64
      %22 = vsyncadd [#allocation3], %s21
      %s24 = sshll.u32 [#allocation2], 4
      %s25 = int_to_ptr.vmem [resolvable:$true] %s24
      %27 = dma.hbm_to_vmem [thread:$0]  %s2, 64, %s25, [#allocation3]
    $region13: #{tpu_custom_call.1} parent=1 // pred_fallthru
      _
    // Predicated region
    $region14: #{tpu_custom_call.1} parent=1 // pred_check
      _
    $region15: #{tpu_custom_call.1} parent=1 // pred_check_branch
      %29 = sbr.rel (0) target = $region17
    $region16: #{tpu_custom_call.1} parent=1 // pred_region
      _
    $region17: #{tpu_custom_call.1} parent=1 // pred_fallthru
      _
    // Predicated region
    $region18: #{tpu_custom_call.1} parent=1 // pred_check
      _
    $region19: #{tpu_custom_call.1} parent=1 // pred_check_branch
      %31 = sbr.rel (0) target = $region21
    $region20: #{tpu_custom_call.1} parent=1 // pred_region
      %32 = dma.done [#allocation3], 64
    $region21: #{tpu_custom_call.1} parent=1 // pred_fallthru
      _
    %v33 = vld [vmem:[%s0] sm:$0xff]
    %v34 = vcvt.f32.s32.to.zero.pseudo %v33
    %v35 = vlaneseq
    %v36 = vand.u32 %v35, 127
    %37 = vset.pattern.permute.xlu0 4
    %38 = vperm.xlu0 %37, %v34
    %v39 = vpop.permute.xlu0 %38
    %vm40 = vcmp.eq.s32.totalorder %v39, %v36
    %v41 = vsel %vm40, 1, 0
    %v42 = vcvt.s32.f32 %v41
    %v43 = vld [vmem:[%s1] sm:$0xff]
    %v44 = vld [vmem:[%s1 + $0x8] sm:$0xff]
    %v45 = vld [vmem:[%s1 + $0x10] sm:$0xff]
    %v46 = vld [vmem:[%s1 + $0x18] sm:$0xff]
    %v47 = vld [vmem:[%s1 + $0x20] sm:$0xff]
    %v48 = vld [vmem:[%s1 + $0x28] sm:$0xff]
    %v49 = vld [vmem:[%s1 + $0x30] sm:$0xff]
    %v50 = vld [vmem:[%s1 + $0x38] sm:$0xff]
    %v51 = vld [vmem:[%s1 + $0x40] sm:$0xff]
    %v52 = vld [vmem:[%s1 + $0x48] sm:$0xff]
    %v53 = vld [vmem:[%s1 + $0x50] sm:$0xff]
    %v54 = vld [vmem:[%s1 + $0x58] sm:$0xff]
    %v55 = vld [vmem:[%s1 + $0x60] sm:$0xff]
    %v56 = vld [vmem:[%s1 + $0x68] sm:$0xff]
    %v57 = vld [vmem:[%s1 + $0x70] sm:$0xff]
    %v58 = vld [vmem:[%s1 + $0x78] sm:$0xff]
    %v59 = vld [vmem:[#allocation2] sm:$0x7]
    %vm60 = vcmask 23552
    %v62 = vsel %vm60, %v33, 0
    %vm64 = vcmask 1042432
    %v66 = vsel %vm64, %v59, 0
    %68 = vmatprep.subr.mxu0 0.0
    %69 = vmatpush1.msra.mxu0 0.0
    %70 = vmatprep.subr.mxu0 0.0
    %71 = vmatpush1.msra.mxu0 0.0
    %72 = vmatprep.subr.mxu0 0.0
    %73 = vmatpush1.msra.mxu0 0.0
    %74 = vmatprep.subr.mxu0 0.0
    %75 = vmatpush1.msra.mxu0 0.0
    %76 = vmatprep.subr.mxu0 0.0
    %77 = vmatpush1.msra.mxu0 0.0
    %78 = vmatprep.subr.mxu0 0.0
    %79 = vmatpush1.msra.mxu0 0.0
    %80 = vmatprep.subr.mxu0 0.0
    %81 = vmatpush1.msra.mxu0 0.0
    %82 = vmatprep.subr.mxu0 0.0
    %83 = vmatpush1.msra.mxu0 0.0
    %84 = vmatprep.subr.mxu0 0.0
    %85 = vmatpush1.msra.mxu0 0.0
    %86 = vmatprep.subr.mxu0 0.0
    %87 = vmatpush1.msra.mxu0 0.0
    %88 = vmatprep.subr.mxu0 0.0
    %89 = vmatpush1.msra.mxu0 0.0
    %90 = vmatprep.subr.mxu0 0.0
    %91 = vmatpush1.msra.mxu0 0.0
    %92 = vmatprep.subr.mxu0 0.0
    %93 = vmatpush1.msra.mxu0 0.0
    %94 = vmatprep.subr.mxu0 0.0
    %95 = vmatpush1.msra.mxu0 0.0
    %96 = vmatprep.subr.mxu0 0.0
    %97 = vmatpush1.msra.mxu0 0.0
    %98 = vmatprep.subr.mxu0 0.0
    %99 = vmatpush1.msra.mxu0 %v66
    %100 = vmatprep.subr.mxu0 0.0
    %101 = vmatpush2.msra.mxu0 0.0
    %102 = vmatprep.subr.mxu0 0.0
    %103 = vmatpush2.msra.mxu0 0.0
    %104 = vmatprep.subr.mxu0 0.0
    %105 = vmatpush2.msra.mxu0 0.0
    %106 = vmatprep.subr.mxu0 0.0
    %107 = vmatpush2.msra.mxu0 0.0
    %108 = vmatprep.subr.mxu0 0.0
    %109 = vmatpush2.msra.mxu0 0.0
    %110 = vmatprep.subr.mxu0 0.0
    %111 = vmatpush2.msra.mxu0 0.0
    %112 = vmatprep.subr.mxu0 0.0
    %113 = vmatpush2.msra.mxu0 0.0
    %114 = vmatprep.subr.mxu0 0.0
    %115 = vmatpush2.msra.mxu0 0.0
    %116 = vmatprep.subr.mxu0 0.0
    %117 = vmatpush2.msra.mxu0 0.0
    %118 = vmatprep.subr.mxu0 0.0
    %119 = vmatpush2.msra.mxu0 0.0
    %120 = vmatprep.subr.mxu0 0.0
    %121 = vmatpush2.msra.mxu0 0.0
    %122 = vmatprep.subr.mxu0 0.0
    %123 = vmatpush2.msra.mxu0 0.0
    %124 = vmatprep.subr.mxu0 0.0
    %125 = vmatpush2.msra.mxu0 0.0
    %126 = vmatprep.subr.mxu0 0.0
    %127 = vmatpush2.msra.mxu0 0.0
    %128 = vmatprep.subr.mxu0 0.0
    %129 = vmatpush2.msra.mxu0 0.0
    %130 = vmatprep.subr.mxu0 0.0
    %131 = vmatpush2.msra.mxu0 0.0
    %132 = vmatprep.mubr.f32.mxu0 0.0
    %133 = vmatmul.mubr.f32.gmra.mxu0 %v62
    %v134 = vpop.f32.mrf.mxu0
    %v135 = vadd.f32 0.0, %v134
    %v136 = vpop.f32.mrf.mxu0
    %137 = vdwg.mxu0
    %138 = vmatprep.subr.mxu0 0.0
    %139 = vmatpush1.msra.mxu0 %v58
    %140 = vmatprep.subr.mxu0 0.0
    %141 = vmatpush1.msra.mxu0 %v57
    %142 = vmatprep.subr.mxu0 0.0
    %143 = vmatpush1.msra.mxu0 %v56
    %144 = vmatprep.subr.mxu0 0.0
    %145 = vmatpush1.msra.mxu0 %v55
    %146 = vmatprep.subr.mxu0 0.0
    %147 = vmatpush1.msra.mxu0 %v54
    %148 = vmatprep.subr.mxu0 0.0
    %149 = vmatpush1.msra.mxu0 %v53
    %150 = vmatprep.subr.mxu0 0.0
    %151 = vmatpush1.msra.mxu0 %v52
    %152 = vmatprep.subr.mxu0 0.0
    %153 = vmatpush1.msra.mxu0 %v51
    %154 = vmatprep.subr.mxu0 0.0
    %155 = vmatpush1.msra.mxu0 %v50
    %156 = vmatprep.subr.mxu0 0.0
    %157 = vmatpush1.msra.mxu0 %v49
    %158 = vmatprep.subr.mxu0 0.0
    %159 = vmatpush1.msra.mxu0 %v48
    %160 = vmatprep.subr.mxu0 0.0
    %161 = vmatpush1.msra.mxu0 %v47
    %162 = vmatprep.subr.mxu0 0.0
    %163 = vmatpush1.msra.mxu0 %v46
    %164 = vmatprep.subr.mxu0 0.0
    %165 = vmatpush1.msra.mxu0 %v45
    %166 = vmatprep.subr.mxu0 0.0
    %167 = vmatpush1.msra.mxu0 %v44
    %168 = vmatprep.subr.mxu0 0.0
    %169 = vmatpush1.msra.mxu0 %v43
    %170 = vmatprep.subr.mxu0 0.0
    %171 = vmatpush2.msra.mxu0 0.0
    %172 = vmatprep.subr.mxu0 0.0
    %173 = vmatpush2.msra.mxu0 0.0
    %174 = vmatprep.subr.mxu0 0.0
    %175 = vmatpush2.msra.mxu0 0.0
    %176 = vmatprep.subr.mxu0 0.0
    %177 = vmatpush2.msra.mxu0 0.0
    %178 = vmatprep.subr.mxu0 0.0
    %179 = vmatpush2.msra.mxu0 0.0
    %180 = vmatprep.subr.mxu0 0.0
    %181 = vmatpush2.msra.mxu0 0.0
    %182 = vmatprep.subr.mxu0 0.0
    %183 = vmatpush2.msra.mxu0 0.0
    %184 = vmatprep.subr.mxu0 0.0
    %185 = vmatpush2.msra.mxu0 0.0
    %186 = vmatprep.subr.mxu0 0.0
    %187 = vmatpush2.msra.mxu0 0.0
    %188 = vmatprep.subr.mxu0 0.0
    %189 = vmatpush2.msra.mxu0 0.0
    %190 = vmatprep.subr.mxu0 0.0
    %191 = vmatpush2.msra.mxu0 0.0
    %192 = vmatprep.subr.mxu0 0.0
    %193 = vmatpush2.msra.mxu0 0.0
    %194 = vmatprep.subr.mxu0 0.0
    %195 = vmatpush2.msra.mxu0 0.0
    %196 = vmatprep.subr.mxu0 0.0
    %197 = vmatpush2.msra.mxu0 0.0
    %198 = vmatprep.subr.mxu0 0.0
    %199 = vmatpush2.msra.mxu0 0.0
    %200 = vmatprep.subr.mxu0 0.0
    %201 = vmatpush2.msra.mxu0 0.0
    %202 = vmatprep.mubr.f32.mxu0 0.0
    %203 = vmatmul.mubr.f32.gmra.mxu0 %v42
    %v204 = vpop.f32.mrf.mxu0
    %v205 = vadd.f32 %v135, %v204
    %v206 = vpop.f32.mrf.mxu0
    %207 = vdwg.mxu0
    %v208 = vtanh.pop %v205
    %209 = vset.pattern.permute.xlu0 3
    %210 = vperm.xlu0 %209, %v33
    %v211 = vpop.permute.xlu0 %210
    %v213 = vmul.f32 %v211, %v208
    %v214 = vrot.slane %v213, 4
    %v215 = vadd.f32 %v213, %v214
    %v216 = vrot.slane %v215, 2
    %v217 = vadd.f32 %v215, %v216
    %v218 = vrot.slane %v217, 1
    %v219 = vadd.f32 %v217, %v218
    %220 = vst [vmem:[#allocation5] sm:$0xff] %v219
    %v221 = vmul.f32 %v208, %v208
    %v222 = vsub.f32 1.0, %v221
    %v223 = vld [vmem:[%s3] sm:$0xff]
    %v224 = vld [vmem:[%s3 + $0x8] sm:$0xff]
    %v225 = vld [vmem:[%s3 + $0x10] sm:$0xff]
    %v226 = vld [vmem:[%s3 + $0x18] sm:$0xff]
    %v227 = vld [vmem:[%s3 + $0x20] sm:$0xff]
    %v228 = vld [vmem:[%s3 + $0x28] sm:$0xff]
    %v229 = vld [vmem:[%s3 + $0x30] sm:$0xff]
    %v230 = vld [vmem:[%s3 + $0x38] sm:$0xff]
    %v231 = vld [vmem:[%s3 + $0x40] sm:$0xff]
    %v232 = vld [vmem:[%s3 + $0x48] sm:$0xff]
    %v233 = vld [vmem:[%s3 + $0x50] sm:$0xff]
    %v234 = vld [vmem:[%s3 + $0x58] sm:$0xff]
    %v235 = vld [vmem:[%s3 + $0x60] sm:$0xff]
    %v236 = vld [vmem:[%s3 + $0x68] sm:$0xff]
    %v237 = vld [vmem:[%s3 + $0x70] sm:$0xff]
    %v238 = vld [vmem:[%s3 + $0x78] sm:$0xff]
    %239 = vmatprep.subr.mxu0 0.0
    %240 = vmatpush1.msra.mxu0 %v238
    %241 = vmatprep.subr.mxu0 0.0
    %242 = vmatpush1.msra.mxu0 %v237
    %243 = vmatprep.subr.mxu0 0.0
    %244 = vmatpush1.msra.mxu0 %v236
    %245 = vmatprep.subr.mxu0 0.0
    %246 = vmatpush1.msra.mxu0 %v235
    %247 = vmatprep.subr.mxu0 0.0
    %248 = vmatpush1.msra.mxu0 %v234
    %249 = vmatprep.subr.mxu0 0.0
    %250 = vmatpush1.msra.mxu0 %v233
    %251 = vmatprep.subr.mxu0 0.0
    %252 = vmatpush1.msra.mxu0 %v232
    %253 = vmatprep.subr.mxu0 0.0
    %254 = vmatpush1.msra.mxu0 %v231
    %255 = vmatprep.subr.mxu0 0.0
    %256 = vmatpush1.msra.mxu0 %v230
    %257 = vmatprep.subr.mxu0 0.0
    %258 = vmatpush1.msra.mxu0 %v229
    %259 = vmatprep.subr.mxu0 0.0
    %260 = vmatpush1.msra.mxu0 %v228
    %261 = vmatprep.subr.mxu0 0.0
    %262 = vmatpush1.msra.mxu0 %v227
    %263 = vmatprep.subr.mxu0 0.0
    %264 = vmatpush1.msra.mxu0 %v226
    %265 = vmatprep.subr.mxu0 0.0
    %266 = vmatpush1.msra.mxu0 %v225
    %267 = vmatprep.subr.mxu0 0.0
    %268 = vmatpush1.msra.mxu0 %v224
    %269 = vmatprep.subr.mxu0 0.0
    %270 = vmatpush1.msra.mxu0 %v223
    %271 = vmatprep.subr.mxu0 0.0
    %272 = vmatpush2.msra.mxu0 0.0
    %273 = vmatprep.subr.mxu0 0.0
    %274 = vmatpush2.msra.mxu0 0.0
    %275 = vmatprep.subr.mxu0 0.0
    %276 = vmatpush2.msra.mxu0 0.0
    %277 = vmatprep.subr.mxu0 0.0
    %278 = vmatpush2.msra.mxu0 0.0
    %279 = vmatprep.subr.mxu0 0.0
    %280 = vmatpush2.msra.mxu0 0.0
    %281 = vmatprep.subr.mxu0 0.0
    %282 = vmatpush2.msra.mxu0 0.0
    %283 = vmatprep.subr.mxu0 0.0
    %284 = vmatpush2.msra.mxu0 0.0
    %285 = vmatprep.subr.mxu0 0.0
    %286 = vmatpush2.msra.mxu0 0.0
    %287 = vmatprep.subr.mxu0 0.0
    %288 = vmatpush2.msra.mxu0 0.0
    %289 = vmatprep.subr.mxu0 0.0
    %290 = vmatpush2.msra.mxu0 0.0
    %291 = vmatprep.subr.mxu0 0.0
    %292 = vmatpush2.msra.mxu0 0.0
    %293 = vmatprep.subr.mxu0 0.0
    %294 = vmatpush2.msra.mxu0 0.0
    %295 = vmatprep.subr.mxu0 0.0
    %296 = vmatpush2.msra.mxu0 0.0
    %297 = vmatprep.subr.mxu0 0.0
    %298 = vmatpush2.msra.mxu0 0.0
    %299 = vmatprep.subr.mxu0 0.0
    %300 = vmatpush2.msra.mxu0 0.0
    %301 = vmatprep.subr.mxu0 0.0
    %302 = vmatpush2.msra.mxu0 0.0
    %303 = vmatprep.mubr.f32.mxu0 0.0
    %304 = vmatmul.mubr.f32.gmra.mxu0 %v222
    %v305 = vpop.f32.mrf.mxu0
    %v306 = vadd.f32 0.0, %v305
    %v307 = vpop.f32.mrf.mxu0
    %308 = vdwg.mxu0
    %v309 = vmul.f32 %v306, %v211
    %vm310 = vcmask 48128
    %311 = vst.msk [vmem:[#allocation6] sm:$0xff] %vm310, %v309
    // Predicated region
    $region22: #{tpu_custom_call.1} parent=1 // pred_check
      _
    $region23: #{tpu_custom_call.1} parent=1 // pred_check_branch
      %313 = sbr.rel (0) target = $region25
    $region24: #{tpu_custom_call.1} parent=1 // pred_region
      %s315 = ssub.s32 128, 128
      %316 = vsyncadd [#allocation4], %s315
      %s318 = sshll.u32 [#allocation5], 4
      %s319 = int_to_ptr.vmem [resolvable:$true] %s318
      %321 = dma.vmem_to_hbm [thread:$0]  %s319, 128, %s4, [#allocation4]
    $region25: #{tpu_custom_call.1} parent=1 // pred_fallthru
      _
    // Predicated region
    $region26: #{tpu_custom_call.1} parent=1 // pred_check
      _
    $region27: #{tpu_custom_call.1} parent=1 // pred_check_branch
      %323 = sbr.rel (0) target = $region29
    $region28: #{tpu_custom_call.1} parent=1 // pred_region
      %s325 = ssub.s32 128, 128
      %326 = vsyncadd [#allocation7], %s325
      %s328 = sshll.u32 [#allocation6], 4
      %s329 = int_to_ptr.vmem [resolvable:$true] %s328
      %331 = dma.vmem_to_hbm [thread:$0]  %s329, 128, %s5, [#allocation7]
    $region29: #{tpu_custom_call.1} parent=1 // pred_fallthru
      _
    // Predicated region
    $region30: #{tpu_custom_call.1} parent=1 // pred_check
      _
    $region31: #{tpu_custom_call.1} parent=1 // pred_check_branch
      %333 = sbr.rel (0) target = $region33
    $region32: #{tpu_custom_call.1} parent=1 // pred_region
      %334 = dma.done [#allocation4], 128
    $region33: #{tpu_custom_call.1} parent=1 // pred_fallthru
      _
    // Predicated region
    $region34: #{tpu_custom_call.1} parent=1 // pred_check
      _
    $region35: #{tpu_custom_call.1} parent=1 // pred_check_branch
      %336 = sbr.rel (0) target = $region37
    $region36: #{tpu_custom_call.1} parent=1 // pred_region
      %337 = dma.done [#allocation7], 128
    $region37: #{tpu_custom_call.1} parent=1 // pred_fallthru
      _
    %338 = vsyncpa [#allocation3], 1
    %339 = vsyncpa [#allocation4], 1
    %340 = vsyncpa [#allocation7], 1

</llo_original>
